<compile_context>
chip_gen: v5e
topology: v5e:2x2
jax: 0.10.0
libtpu: 0.0.40
codegen_flags: <defaults>
</compile_context>

<pallas_src>
import functools

import jax
import jax.numpy as jnp
from jax.experimental import pallas as pl
from jax.experimental.pallas import tpu as pltpu


_MIN_SPLIT_B = 16384   # batches at least this big get >=2 blocks (v7x megacore)


def _cdiv(a, b):
    return (a + b - 1) // b


def _round_up(n, m):
    return _cdiv(n, m) * m


def _baseline_kernel(w_ref, b_ref, wrow_ref, st_ref, o_ref, *,
                     inv_denom, tile_b, d_in):
    """y[b] = sum_d states[b, d] * w[d]  +  ns(b) * w[D]  +  bias.

    w_ref:    SMEM (D+1,) f32   full weight vector (last entry = ns weight)
    b_ref:    SMEM (1,)   f32   bias
    wrow_ref: VMEM (1, D) f32   state-feature weights (resident across steps)
    st_ref:   VMEM (tile_b, D)  states tile, natural layout, input dtype
    o_ref:    VMEM (tile_b, 1)  f32 output tile
    """
    i = pl.program_id(0)

    # ns term folded to two scalars (scalar unit, free next to the vector pipe):
    #   ns(b) * w[D] + bias = b * c1 + c0,   with b = i*tile_b + row
    c1 = w_ref[d_in] * inv_denom
    c0 = (i * tile_b) * c1 + b_ref[0]

    x = st_ref[...].astype(jnp.float32)              # (tile_b, D)
    w = wrow_ref[...].astype(jnp.float32)            # (1, D)
    feat = jnp.sum(x * w, axis=1, keepdims=True)     # one VPU mul + XLU reduce

    row = jax.lax.broadcasted_iota(jnp.int32, (tile_b, 1), 0).astype(jnp.float32)
    o_ref[...] = (feat + row * c1 + c0).astype(o_ref.dtype)


def baseline_forward(states, weight, bias, *, max_tile_b=8192):
    """states: (B, D) float, weight: (1, D+1) f32 (torch layout), bias: (1,) f32."""
    B, D = states.shape
    weight = weight.astype(jnp.float32)
    bias = bias.astype(jnp.float32)
    w_flat = weight.reshape(-1)          # (D+1,) -> SMEM scalars
    b_flat = bias.reshape(-1)            # (1,)   -> SMEM scalar
    w_row = weight[:, :D]                # (1, D) state-feature weights (tiny)

    # Tile selection: as large as possible (amortize per-step overhead), but
    # (a) VMEM-aware and (b) >= 2 blocks for big batches so v7x megacore can
    # split the batch axis across its two TensorCores.
    tile_b = min(int(max_tile_b), B)
    if B >= _MIN_SPLIT_B:
        tile_b = min(tile_b, _round_up(_cdiv(B, 2), 8))
    if tile_b < B:
        tile_b = max(8, (tile_b // 8) * 8)   # interior blocks: sublane multiple of 8
    grid = (_cdiv(B, tile_b),)

    # torch.linspace(0, 1, 1) == [0.]  -> inv_denom irrelevant for B == 1.
    inv_denom = 1.0 / float(B - 1) if B > 1 else 0.0

    kernel = functools.partial(
        _baseline_kernel, inv_denom=inv_denom, tile_b=tile_b, d_in=D)

    return pl.pallas_call(
        kernel,
        out_shape=jax.ShapeDtypeStruct((B, 1), jnp.float32),
        grid=grid,
        in_specs=[
            pl.BlockSpec(memory_space=pltpu.MemorySpace.SMEM),   # (D+1,) weights
            pl.BlockSpec(memory_space=pltpu.MemorySpace.SMEM),   # (1,) bias
            pl.BlockSpec((1, D), lambda i: (0, 0)),              # resident weight row
            pl.BlockSpec((tile_b, D), lambda i: (i, 0)),         # states tile
        ],
        out_specs=pl.BlockSpec((tile_b, 1), lambda i: (i, 0)),
        compiler_params=pltpu.CompilerParams(
            dimension_semantics=("parallel",),
            vmem_limit_bytes=32 * 1024 * 1024,
        ),
    )(w_flat, b_flat, w_row, states)


def _reference(states, weight, bias):
    B = states.shape[0]
    ns = jnp.linspace(0.0, 1.0, B, dtype=jnp.float32).reshape(-1, 1)
    x = jnp.concatenate([states.astype(jnp.float32), ns], axis=1)
    return x @ weight.astype(jnp.float32).T + bias.astype(jnp.float32)


if __name__ == "__main__":
    key = jax.random.PRNGKey(0)
    D = 4                                            # Baseline(input_size=4)
    k_w, k_b, k_s1, k_s2 = jax.random.split(key, 4)

    # nn.Linear default init: U(-1/sqrt(fan_in), 1/sqrt(fan_in)), fan_in = D+1.
    bound = 1.0 / float(D + 1) ** 0.5
    weight = jax.random.uniform(k_w, (1, D + 1), jnp.float32, -bound, bound)
    bias = jax.random.uniform(k_b, (1,), jnp.float32, -bound, bound)

    # Small batch: single full block.
    B1 = 8
    states1 = jax.random.normal(k_s1, (B1, D), dtype=jnp.float32)
    out1 = jax.block_until_ready(baseline_forward(states1, weight, bias))
    ref1 = _reference(states1, weight, bias)
    assert out1.shape == (B1, 1)
    assert jnp.allclose(out1, ref1, atol=1e-5, rtol=1e-5), (out1, ref1)

    # Ragged batch with a small tile: exercises the multi-block grid and the
    # masked partial edge block.
    B2 = 300
    states2 = jax.random.normal(k_s2, (B2, D), dtype=jnp.float32)
    out2 = jax.block_until_ready(
        baseline_forward(states2, weight, bias, max_tile_b=128))
    ref2 = _reference(states2, weight, bias)
    assert out2.shape == (B2, 1)
    assert jnp.allclose(out2, ref2, atol=1e-5, rtol=1e-5)

    # TODO(synk): trainIteration (MSELoss + SGD optimizer step) is training-side
    # logic outside the forward pass and is not implemented as a kernel.
    print("KERNEL_OK")
</pallas_src>

<mosaic_0001>
module attributes {stable_mosaic.version = 11 : i64} {
  func.func @_baseline_kernel(%arg0: i32, %arg1: memref<5xf32, #tpu.memory_space<smem>>, %arg2: memref<1xf32, #tpu.memory_space<smem>>, %arg3: memref<1x4xf32, #tpu.memory_space<vmem>>, %arg4: memref<8x4xf32, #tpu.memory_space<vmem>>, %arg5: memref<8x1xf32, #tpu.memory_space<vmem>>) attributes {dimension_semantics = [#tpu.dimension_semantics<parallel>], iteration_bounds = array<i64: 1>, scalar_prefetch = 0 : i64, scratch_operands = 0 : i64, tpu.core_type = #tpu.core_type<tc>, window_params = [{transform_indices = @transform_0, window_bounds = array<i64: 5>}, {transform_indices = @transform_1, window_bounds = array<i64: 1>}, {pipeline_mode = #tpu.pipeline_mode<synchronous>, transform_indices = @transform_2, window_bounds = array<i64: 1, 4>}, {transform_indices = @transform_3, window_bounds = array<i64: 8, 4>}, {transform_indices = @transform_4, window_bounds = array<i64: 8, 1>}]} {
    %c4 = arith.constant 4 : index
    %0 = memref.load %arg1[%c4] : memref<5xf32, #tpu.memory_space<smem>>
    %cst = arith.constant 0.142857149 : f32
    %1 = arith.mulf %0, %cst : f32
    %c8_i32 = arith.constant 8 : i32
    %2 = arith.muli %arg0, %c8_i32 : i32
    %3 = arith.sitofp %2 : i32 to f32
    %4 = arith.mulf %3, %1 : f32
    %c0 = arith.constant 0 : index
    %5 = memref.load %arg2[%c0] : memref<1xf32, #tpu.memory_space<smem>>
    %6 = arith.addf %4, %5 : f32
    %c0_0 = arith.constant 0 : index
    %c0_1 = arith.constant 0 : index
    %7 = vector.load %arg4[%c0_0, %c0_1] : memref<8x4xf32, #tpu.memory_space<vmem>>, vector<8x4xf32>
    %c0_2 = arith.constant 0 : index
    %c0_3 = arith.constant 0 : index
    %8 = vector.load %arg3[%c0_2, %c0_3] : memref<1x4xf32, #tpu.memory_space<vmem>>, vector<1x4xf32>
    %9 = vector.broadcast %8 : vector<1x4xf32> to vector<8x4xf32>
    %10 = arith.mulf %7, %9 : vector<8x4xf32>
    %cst_4 = arith.constant dense<0.000000e+00> : vector<8xf32>
    %11 = vector.multi_reduction <add>, %10, %cst_4 [1] : vector<8x4xf32> to vector<8xf32>
    %12 = vector.shape_cast %11 : vector<8xf32> to vector<8x1xf32>
    %13 = tpu.iota {dimensions = array<i32: 0>} : vector<8x1xi32>
    %14 = arith.sitofp %13 : vector<8x1xi32> to vector<8x1xf32>
    %15 = vector.broadcast %1 : f32 to vector<8x1xf32>
    %16 = arith.mulf %14, %15 : vector<8x1xf32>
    %17 = arith.addf %12, %16 : vector<8x1xf32>
    %18 = vector.broadcast %6 : f32 to vector<8x1xf32>
    %19 = arith.addf %17, %18 : vector<8x1xf32>
    %c0_5 = arith.constant 0 : index
    %c0_6 = arith.constant 0 : index
    %20 = vector.load %arg5[%c0_5, %c0_6] : memref<8x1xf32, #tpu.memory_space<vmem>>, vector<8x1xf32>
    tpu.vector_store %arg5[%c0_5, %c0_6], %19 {strides = array<i32>} : memref<8x1xf32, #tpu.memory_space<vmem>>, vector<8x1xf32>,
    return
  }
  func.func @transform_0(%arg0: i32) -> i32 {
    %c0_i32 = arith.constant 0 : i32
    %c0_i32_0 = arith.constant 0 : i32
    return %c0_i32 : i32
  }
  func.func @transform_1(%arg0: i32) -> i32 {
    %c0_i32 = arith.constant 0 : i32
    %c0_i32_0 = arith.constant 0 : i32
    return %c0_i32 : i32
  }
  func.func @transform_2(%arg0: i32) -> (i32, i32) {
    %c0_i32 = arith.constant 0 : i32
    %c0_i32_0 = arith.constant 0 : i32
    %c0_i32_1 = arith.constant 0 : i32
    return %c0_i32, %c0_i32_0 : i32, i32
  }
  func.func @transform_3(%arg0: i32) -> (i32, i32) {
    %c0_i32 = arith.constant 0 : i32
    %c0_i32_0 = arith.constant 0 : i32
    return %arg0, %c0_i32 : i32, i32
  }
  func.func @transform_4(%arg0: i32) -> (i32, i32) {
    %c0_i32 = arith.constant 0 : i32
    %c0_i32_0 = arith.constant 0 : i32
    return %arg0, %c0_i32 : i32, i32
  }
}

</mosaic_0001>

<llo_original>
// kernel: tpu_custom_call.1
$region0: #{tpu_custom_call.1}
  #allocation0 [shape = 'u32[]', space=smem, size = 0x4, offset = 0x4, fixed_abs, tag = 'smem constant byte address 0x4 - core index']
  #allocation1 [shape = 'u32[72,128]{1,0:T(1,128)}', space=vmem, size = 0x9000, scoped, tag = 'internal scratch']
  #allocation2 [shape = 'f32[1]{0:T(128)S(6)}', space=smem, size = 0x200, scoped, tag = 'scoped memory for tpu_custom_call.1']
  %s0 = inlined_call_operand.vmem [shape: f32[5], index: 0, kind: input, shape index: {}]
  %s1 = inlined_call_operand.<no memory space> [shape: f32[1], index: 1, kind: input, shape index: {}]
  %s2 = inlined_call_operand.vmem [shape: f32[1,4], index: 2, kind: input, shape index: {}]
  %s3 = inlined_call_operand.vmem [shape: f32[8,4], index: 3, kind: input, shape index: {}]
  %s4 = inlined_call_operand.vmem [shape: f32[8,1], index: 4, kind: output, shape index: {}]
  %s5 = sld [smem:[#allocation0]]
  $region30: #{tpu_custom_call.1} parent=0
    _
  %s7 = ssub.s32 1, %s5
  %s8 = scalar_select 0, %s7, %s5
  %9 = sst [smem:[#allocation2]] %s1
  $region1: #{tpu_custom_call.1} parent=0
    #allocation3 [shape = 'u8[512]{0}', space=smem, size = 0x200, scoped, tag = 'input window, operand 0, single buffered']
    #allocation4 [shape = 's32[1]{0}', space=sflag, size = 0x4, scoped, tag = 'scoped memory for tpu_custom_call.1']
    %10 = vsyncpa [#allocation4], 0
    // Predicated region
    $region2: #{tpu_custom_call.1} parent=1 // pred_check
      _
    $region3: #{tpu_custom_call.1} parent=1 // pred_check_branch
      %12 = sbr.rel (0) target = $region5
    $region4: #{tpu_custom_call.1} parent=1 // pred_region
      %14 = vsyncadd [#allocation4], 0
      %s16 = sshll.u32 %s0, 4
      %s17 = int_to_ptr.vmem [resolvable:$true] %s16
      %19 = dma.vmem_to_smem %s17, 16, [#allocation3], [#allocation4]
    $region5: #{tpu_custom_call.1} parent=1 // pred_fallthru
      _
    // Predicated region
    $region6: #{tpu_custom_call.1} parent=1 // pred_check
      _
    $region7: #{tpu_custom_call.1} parent=1 // pred_check_branch
      %21 = sbr.rel (0) target = $region9
    $region8: #{tpu_custom_call.1} parent=1 // pred_region
      _
    $region9: #{tpu_custom_call.1} parent=1 // pred_fallthru
      _
    // Predicated region
    $region10: #{tpu_custom_call.1} parent=1 // pred_check
      _
    $region11: #{tpu_custom_call.1} parent=1 // pred_check_branch
      %23 = sbr.rel (0) target = $region13
    $region12: #{tpu_custom_call.1} parent=1 // pred_region
      _
    $region13: #{tpu_custom_call.1} parent=1 // pred_fallthru
      _
    // Predicated region
    $region14: #{tpu_custom_call.1} parent=1 // pred_check
      _
    $region15: #{tpu_custom_call.1} parent=1 // pred_check_branch
      %25 = sbr.rel (0) target = $region17
    $region16: #{tpu_custom_call.1} parent=1 // pred_region
      _
    $region17: #{tpu_custom_call.1} parent=1 // pred_fallthru
      _
    // Predicated region
    $region18: #{tpu_custom_call.1} parent=1 // pred_check
      _
    $region19: #{tpu_custom_call.1} parent=1 // pred_check_branch
      %27 = sbr.rel (0) target = $region21
    $region20: #{tpu_custom_call.1} parent=1 // pred_region
      %29 = dma.done [#allocation4], 16
    $region21: #{tpu_custom_call.1} parent=1 // pred_fallthru
      _
    %30 = sfence
    %s31 = sld [smem:[#allocation3 + $0x4]]
    %s32 = smul.f32 %s31, 0.14285715
    %s33 = smul.u32 0, 8
    %s34 = scvt.s32.f32 %s33
    %s35 = smul.f32 %s34, %s32
    %s36 = sld [smem:[#allocation2]]
    %s37 = sadd.f32 %s35, %s36
    %v38 = vld [vmem:[%s3] sm:$0xff]
    %v39 = vld [vmem:[%s2] sm:$0x1]
    %v41 = vperm.slane %v39, 0
    %v43 = vmul.f32 %v38, %v41
    %vm44 = vcmask 31744
    %v45 = vsel %vm44, %v43, 0.0
    %46 = vadd.xlane.f32.xlu0 %v45
    %v47 = vpop.xlane.xlu0 %46
    %v48 = vlaneseq
    %v49 = vshrl.u32 %v48, 7
    %v50 = vcvt.s32.f32 %v49
    %v51 = vstv %s32
    %v52 = vmul.f32 %v50, %v51
    %v53 = vadd.f32 %v47, %v52
    %v54 = vstv %s37
    %v55 = vadd.f32 %v53, %v54
    %vm56 = vcmask 7168
    %57 = vst.msk [vmem:[%s4] sm:$0xff] %vm56, %v55
    // Predicated region
    $region22: #{tpu_custom_call.1} parent=1 // pred_check
      _
    $region23: #{tpu_custom_call.1} parent=1 // pred_check_branch
      %59 = sbr.rel (0) target = $region25
    $region24: #{tpu_custom_call.1} parent=1 // pred_region
      _
    $region25: #{tpu_custom_call.1} parent=1 // pred_fallthru
      _
    // Predicated region
    $region26: #{tpu_custom_call.1} parent=1 // pred_check
      _
    $region27: #{tpu_custom_call.1} parent=1 // pred_check_branch
      %61 = sbr.rel (0) target = $region29
    $region28: #{tpu_custom_call.1} parent=1 // pred_region
      _
    $region29: #{tpu_custom_call.1} parent=1 // pred_fallthru
      _
    %62 = vsyncpa [#allocation4], 1

</llo_original>
